<compile_context>
chip_gen: v7x
topology: tpu7x:2x2x1
jax: 0.10.0
libtpu: 0.0.40
codegen_flags: <defaults>
</compile_context>

<pallas_src>
import functools

import jax
import jax.numpy as jnp
from jax.experimental import pallas as pl
from jax.experimental.pallas import tpu as pltpu

_MIB = 1024 * 1024


# --------------------------------------------------------------------------
# Kernels
# --------------------------------------------------------------------------
def _rmsnorm_kernel_noweight(x_ref, o_ref, *, eps):
    x = x_ref[...]
    # Upcast per-use (reduction path / scale path) so Mosaic does not have to
    # keep a whole (row_tile, dim) f32 copy live. Everything is still f32 math.
    ms = jnp.mean(jnp.square(x.astype(jnp.float32)), axis=-1, keepdims=True)
    norm = jax.lax.rsqrt(ms + eps)
    o_ref[...] = (x.astype(jnp.float32) * norm).astype(o_ref.dtype)


def _rmsnorm_kernel_weight(x_ref, w_ref, o_ref, *, eps):
    x = x_ref[...]
    ms = jnp.mean(jnp.square(x.astype(jnp.float32)), axis=-1, keepdims=True)
    norm = jax.lax.rsqrt(ms + eps)
    # w_ref is (1, dim) f32; weight applied in f32 before downcast, exactly
    # like the PyTorch module: (x.float() * norm * weight).to(x_dtype).
    o_ref[...] = (x.astype(jnp.float32) * norm * w_ref[...]).astype(o_ref.dtype)


# --------------------------------------------------------------------------
# Tile sizing helpers
# --------------------------------------------------------------------------
def _round_up(x, m):
    return ((x + m - 1) // m) * m


def _round_down(x, m):
    return (x // m) * m


def _chip_info():
    """Best-effort (is_v7x, vmem_capacity_bytes-or-None)."""
    kind = ""
    try:
        kind = jax.devices()[0].device_kind.lower()
    except Exception:
        pass
    is_v7 = "v7" in kind
    vmem = None
    try:
        info = pltpu.get_tpu_info()
        vmem = getattr(info, "vmem_capacity_bytes", None)
    except Exception:
        pass
    return is_v7, vmem


def _vmem_limit_bytes(is_v7, vmem_cap):
    """Scoped-VMEM limit to request, clamped to the per-TensorCore budget."""
    limit = (vmem_cap * 3 // 4) if vmem_cap else 48 * _MIB
    if is_v7 or (vmem_cap is not None and vmem_cap <= 64 * _MIB):
        # v7x: 64 MiB per TC. get_tpu_info may report an aggregate number, so
        # never request more than 48 MiB here.
        limit = min(limit, 48 * _MIB)
    else:
        # v5e / v6e: 128 MiB physical VMEM.
        limit = min(limit, 96 * _MIB)
    return int(limit)


def _choose_row_tile(n_rows, dim, x_dtype, vmem_limit, is_v7):
    """Pick a row tile; returns None if even the minimal tile can't fit."""
    itemsize = jnp.dtype(x_dtype).itemsize
    # Native sublane packing: 8 rows (f32), 16 (bf16), 32 (int8/fp8).
    packing = max(8, 32 // itemsize)

    # Per block row: double-buffered input + output (2 x itemsize each) plus
    # ~12 B/elem of live f32 intermediates inside the kernel body.
    per_row = dim * (4 * itemsize + 12)
    budget = int(vmem_limit * 0.9)  # single safety factor (no double haircut)

    if per_row * packing > budget:
        return None  # dim too large for even one packing-rows block

    tile = _round_down(budget // per_row, packing)

    # Byte-based cap (~16 MiB of input bytes per block): keeps the ~0.35 us
    # per-step fixed cost negligible on every generation regardless of dim.
    bytes_cap = _round_down((16 * _MIB) // (dim * itemsize), packing)
    tile = min(tile, max(packing, bytes_cap))

    # Minimum grid steps: 8 on v7x (2 TensorCores share the parallel axis),
    # 2 on single-TC v5e / v6e (just enough to keep the pipeline busy).
    min_steps = 8 if is_v7 else 2
    steps_cap = max(packing, _round_up(pl.cdiv(n_rows, min_steps), packing))
    tile = min(tile, steps_cap)

    # No point in a tile larger than the (packing-rounded) row count.
    tile = min(tile, _round_up(n_rows, packing))
    tile = max(tile, packing)

    # v7x: prefer an even step count so both TensorCores get equal work.
    if is_v7:
        steps = pl.cdiv(n_rows, tile)
        if steps > 1 and steps % 2 == 1:
            cand = max(packing, _round_up(pl.cdiv(n_rows, steps + 1), packing))
            if pl.cdiv(n_rows, cand) % 2 == 0:
                tile = cand
    return tile


# --------------------------------------------------------------------------
# Public wrapper
# --------------------------------------------------------------------------
def rms_norm(x, weight=None, eps=1e-6, row_tile=None):
    """RMSNorm over the last axis. `weight` is an optional (dim,) scale."""
    orig_shape = x.shape
    dim = orig_shape[-1]

    # Lane-sparse / unaligned last dims would force masked partial stores
    # (far off the roofline); plain XLA wins there on every generation.
    if dim < 128 or dim % 128 != 0:
        return rms_norm_ref(x, weight=weight, eps=eps)

    x2d = x.reshape(-1, dim)
    n_rows = x2d.shape[0]
    itemsize = jnp.dtype(x2d.dtype).itemsize

    is_v7, vmem_cap = _chip_info()
    vmem_limit = _vmem_limit_bytes(is_v7, vmem_cap)
    if row_tile is None:
        row_tile = _choose_row_tile(n_rows, dim, x2d.dtype, vmem_limit, is_v7)
    if row_tile is None:
        # dim too large for the VMEM budget -> fall back rather than letting
        # Mosaic fail at compile time.
        return rms_norm_ref(x, weight=weight, eps=eps)

    # Ragged last block handled by Pallas masking: rows are independent and
    # the reduction axis (dim) is fully in-bounds, so OOB rows only produce
    # discarded output.
    grid = (pl.cdiv(n_rows, row_tile),)

    x_spec = pl.BlockSpec((row_tile, dim), lambda i: (i, 0))
    o_spec = pl.BlockSpec((row_tile, dim), lambda i: (i, 0))
    out_shape = jax.ShapeDtypeStruct((n_rows, dim), x.dtype)

    compiler_params = pltpu.CompilerParams(
        dimension_semantics=("parallel",),
        vmem_limit_bytes=vmem_limit,
    )

    bytes_accessed = 2 * n_rows * dim * itemsize
    if weight is not None:
        bytes_accessed += dim * 4
    cost = pl.CostEstimate(
        flops=4 * n_rows * dim,
        transcendentals=n_rows,
        bytes_accessed=bytes_accessed,
    )

    if weight is None:
        kernel = functools.partial(_rmsnorm_kernel_noweight, eps=eps)
        out = pl.pallas_call(
            kernel,
            grid=grid,
            in_specs=[x_spec],
            out_specs=o_spec,
            out_shape=out_shape,
            compiler_params=compiler_params,
            cost_estimate=cost,
        )(x2d)
    else:
        kernel = functools.partial(_rmsnorm_kernel_weight, eps=eps)
        # Lane-dense (1, dim) f32 block, constant index_map -> stays resident.
        w2d = weight.reshape(1, dim).astype(jnp.float32)
        w_spec = pl.BlockSpec((1, dim), lambda i: (0, 0))
        out = pl.pallas_call(
            kernel,
            grid=grid,
            in_specs=[x_spec, w_spec],
            out_specs=o_spec,
            out_shape=out_shape,
            compiler_params=compiler_params,
            cost_estimate=cost,
        )(x2d, w2d)

    return out.reshape(orig_shape)


def rms_norm_ref(x, weight=None, eps=1e-6):
    """Pure-JAX reference mirroring the PyTorch forward (also the fallback)."""
    x_dtype = x.dtype
    xf = x.astype(jnp.float32)
    norm = jax.lax.rsqrt(jnp.mean(xf * xf, axis=-1, keepdims=True) + eps)
    out = xf * norm
    if weight is not None:
        out = out * weight.astype(jnp.float32)
    return out.astype(x_dtype)


if __name__ == "__main__":
    key = jax.random.PRNGKey(0)
    k1, k2, k3 = jax.random.split(key, 3)

    # --- Case 1/2: Pallas path, lane-aligned hidden dim --------------------
    batch, seq, hidden = 2, 8, 256
    x = jax.random.normal(k1, (batch, seq, hidden), dtype=jnp.bfloat16)

    # trainable=False -> no weight.
    out_nw = jax.block_until_ready(rms_norm(x, weight=None, eps=1e-6))

    # trainable=True -> weight initialized to ones (as nn.init.ones_ would).
    weight = jnp.ones((hidden,), dtype=jnp.float32)
    out_w = jax.block_until_ready(rms_norm(x, weight=weight, eps=1e-6))

    ref_nw = rms_norm_ref(x, weight=None)
    ref_w = rms_norm_ref(x, weight=weight)
    assert out_nw.dtype == x.dtype and out_nw.shape == x.shape
    assert jnp.allclose(
        out_nw.astype(jnp.float32), ref_nw.astype(jnp.float32), atol=1e-2
    )
    assert jnp.allclose(
        out_w.astype(jnp.float32), ref_w.astype(jnp.float32), atol=1e-2
    )

    # --- Case 3: ragged row count + non-trivial weight (Pallas path) -------
    x2 = jax.random.normal(k2, (3, 7, 256), dtype=jnp.bfloat16)
    w2 = jnp.linspace(0.5, 1.5, 256, dtype=jnp.float32)
    out2 = jax.block_until_ready(rms_norm(x2, weight=w2, eps=1e-6))
    ref2 = rms_norm_ref(x2, weight=w2)
    assert out2.shape == x2.shape and out2.dtype == x2.dtype
    assert jnp.allclose(
        out2.astype(jnp.float32), ref2.astype(jnp.float32), atol=1e-2
    )

    # --- Case 4: tiny hidden dim (32) -> dispatched to the XLA fallback ----
    x3 = jax.random.normal(k3, (2, 8, 32), dtype=jnp.bfloat16)
    out3 = jax.block_until_ready(rms_norm(x3, weight=None, eps=1e-6))
    ref3 = rms_norm_ref(x3, weight=None)
    assert out3.shape == x3.shape and out3.dtype == x3.dtype
    assert jnp.allclose(
        out3.astype(jnp.float32), ref3.astype(jnp.float32), atol=1e-2
    )

    print("KERNEL_OK")
</pallas_src>

<mosaic_0001>
module attributes {stable_mosaic.version = 11 : i64} {
  func.func @_rmsnorm_kernel_noweight(%arg0: i32, %arg1: memref<16x256xbf16, #tpu.memory_space<vmem>>, %arg2: memref<16x256xbf16, #tpu.memory_space<vmem>>) attributes {dimension_semantics = [#tpu.dimension_semantics<parallel>], iteration_bounds = array<i64: 1>, scalar_prefetch = 0 : i64, scratch_operands = 0 : i64, tpu.core_type = #tpu.core_type<tc>, window_params = [{transform_indices = @transform_0, window_bounds = array<i64: 16, 256>}, {transform_indices = @transform_1, window_bounds = array<i64: 16, 256>}]} {
    %c0 = arith.constant 0 : index
    %c0_0 = arith.constant 0 : index
    %0 = vector.load %arg1[%c0, %c0_0] : memref<16x256xbf16, #tpu.memory_space<vmem>>, vector<16x256xbf16>
    %1 = arith.extf %0 : vector<16x256xbf16> to vector<16x256xf32>
    %2 = arith.mulf %1, %1 : vector<16x256xf32>
    %cst = arith.constant dense<0.000000e+00> : vector<16xf32>
    %3 = vector.multi_reduction <add>, %2, %cst [1] : vector<16x256xf32> to vector<16xf32>
    %4 = vector.shape_cast %3 : vector<16xf32> to vector<16x1xf32>
    %cst_1 = arith.constant 2.560000e+02 : f32
    %5 = vector.broadcast %cst_1 : f32 to vector<16x1xf32>
    %6 = arith.divf %4, %5 : vector<16x1xf32>
    %cst_2 = arith.constant 9.99999997E-7 : f32
    %7 = vector.broadcast %cst_2 : f32 to vector<16x1xf32>
    %8 = arith.addf %6, %7 : vector<16x1xf32>
    %9 = math.rsqrt %8 : vector<16x1xf32>
    %10 = arith.extf %0 : vector<16x256xbf16> to vector<16x256xf32>
    %11 = vector.broadcast %9 : vector<16x1xf32> to vector<16x256xf32>
    %12 = arith.mulf %10, %11 : vector<16x256xf32>
    %13 = arith.truncf %12 : vector<16x256xf32> to vector<16x256xbf16>
    %c0_3 = arith.constant 0 : index
    %c0_4 = arith.constant 0 : index
    %14 = vector.load %arg2[%c0_3, %c0_4] : memref<16x256xbf16, #tpu.memory_space<vmem>>, vector<16x256xbf16>
    tpu.vector_store %arg2[%c0_3, %c0_4], %13 {strides = array<i32>} : memref<16x256xbf16, #tpu.memory_space<vmem>>, vector<16x256xbf16>,
    return
  }
  func.func @transform_0(%arg0: i32) -> (i32, i32) {
    %c0_i32 = arith.constant 0 : i32
    %c0_i32_0 = arith.constant 0 : i32
    return %arg0, %c0_i32 : i32, i32
  }
  func.func @transform_1(%arg0: i32) -> (i32, i32) {
    %c0_i32 = arith.constant 0 : i32
    %c0_i32_0 = arith.constant 0 : i32
    return %arg0, %c0_i32 : i32, i32
  }
}

</mosaic_0001>

<llo_original>
// kernel: tpu_custom_call.1
$region0: #{tpu_custom_call.1}
  #allocation0 [shape = 'u32[]', space=smem, size = 0x4, offset = 0x4, fixed_abs, tag = 'smem constant byte address 0x4 - core index']
  #allocation1 [shape = 'u32[144,128]{1,0:T(1,128)}', space=vmem, size = 0x12000, scoped, tag = 'internal scratch']
  %s0 = inlined_call_operand.hbm [shape: bf16[16,256], index: 0, kind: input, shape index: {}]
  %s1 = inlined_call_operand.hbm [shape: bf16[16,256], index: 1, kind: output, shape index: {}]
  %s2 = sld [smem:[#allocation0]]
  $region18: #{tpu_custom_call.1} parent=0
    _
  %s4 = ssub.s32 1, %s2
  %s5 = scalar_select 0, %s4, %s2
  $region1: #{tpu_custom_call.1} parent=0
    #allocation2 [shape = 'u8[8192]{0}', space=vmem, size = 0x2000, scoped, tag = 'input window, operand 0, single buffered']
    #allocation3 [shape = 's32[1]{0}', space=sflag, size = 0x4, scoped, tag = 'scoped memory for tpu_custom_call.1']
    #allocation4 [shape = 's32[1]{0}', space=sflag, size = 0x4, scoped, tag = 'scoped memory for tpu_custom_call.1']
    #allocation5 [shape = 'u8[8192]{0}', space=vmem, size = 0x2000, scoped, tag = 'output window, operand 0, single buffered']
    %6 = vsyncpa [#allocation3], 0
    %7 = vsyncpa [#allocation4], 0
    // Predicated region
    $region2: #{tpu_custom_call.1} parent=1 // pred_check
      _
    $region3: #{tpu_custom_call.1} parent=1 // pred_check_branch
      %9 = sbr.rel (0) target = $region5
    $region4: #{tpu_custom_call.1} parent=1 // pred_region
      %s11 = ssub.s32 256, 256
      %12 = vsyncadd [#allocation3], %s11
      %s13 = sshll.u32 [#allocation2], 4
      %s14 = int_to_ptr.vmem [resolvable:$true] %s13
      %19 = dma.hbm_to_vmem [thread:$0]  %s0, 256, %s14, [#allocation3], 128, 128, 8
    $region5: #{tpu_custom_call.1} parent=1 // pred_fallthru
      _
    // Predicated region
    $region6: #{tpu_custom_call.1} parent=1 // pred_check
      _
    $region7: #{tpu_custom_call.1} parent=1 // pred_check_branch
      %21 = sbr.rel (0) target = $region9
    $region8: #{tpu_custom_call.1} parent=1 // pred_region
      %22 = dma.done [#allocation3], 256
    $region9: #{tpu_custom_call.1} parent=1 // pred_fallthru
      _
    %v23 = vld [vmem:[#allocation2] sm:$0xff]
    %v24 = vld [vmem:[#allocation2 + $0x8] sm:$0xff]
    %v25 = vunpack.c.l.bf16 %v23
    %v26 = vunpack.c.h.bf16 %v23
    %v27 = vunpack.c.l.bf16 %v24
    %v28 = vunpack.c.h.bf16 %v24
    %v29 = vmul.f32 %v25, %v25
    %v30 = vmul.f32 %v26, %v26
    %v31 = vmul.f32 %v27, %v27
    %v32 = vmul.f32 %v28, %v28
    %v33 = vadd.f32 %v29, %v30
    %34 = vadd.xlane.f32.xlu0 %v33
    %v35 = vpop.xlane.xlu0 %34
    %v36 = vadd.f32 %v31, %v32
    %37 = vadd.xlane.f32.xlu0 %v36
    %v38 = vpop.xlane.xlu0 %37
    %v39 = vrcp.pop 256.0
    %v40 = vmul.f32 %v35, %v39
    %v41 = vmul.f32 %v38, %v39
    %v42 = vadd.f32 %v40, 1e-06
    %v43 = vadd.f32 %v41, 1e-06
    %v44 = vrsqrt.pop %v42
    %v45 = vrsqrt.pop %v43
    %v46 = vmul.f32 %v25, %v44
    %v47 = vmul.f32 %v26, %v44
    %v48 = vmul.f32 %v27, %v45
    %v49 = vmul.f32 %v28, %v45
    %v50 = vpack.c.bf16 %v48, %v46
    %v51 = vpack.c.bf16 %v49, %v47
    %v54 = vunpack.c.l.b16 %v50
    %v55 = vunpack.c.l.b16 %v51
    %v56 = vunpack.c.h.b16 %v50
    %v57 = vunpack.c.h.b16 %v51
    %v58 = vpack.c.b16 %v55, %v54
    %v59 = vpack.c.b16 %v57, %v56
    %62 = vst [vmem:[#allocation5] sm:$0xff] %v58
    %63 = vst [vmem:[#allocation5 + $0x8] sm:$0xff] %v59
    // Predicated region
    $region10: #{tpu_custom_call.1} parent=1 // pred_check
      _
    $region11: #{tpu_custom_call.1} parent=1 // pred_check_branch
      %65 = sbr.rel (0) target = $region13
    $region12: #{tpu_custom_call.1} parent=1 // pred_region
      %s67 = ssub.s32 256, 256
      %68 = vsyncadd [#allocation4], %s67
      %s69 = sshll.u32 [#allocation5], 4
      %s70 = int_to_ptr.vmem [resolvable:$true] %s69
      %75 = dma.vmem_to_hbm [thread:$0]  %s70, 256, %s1, [#allocation4], 128, 128, 8
    $region13: #{tpu_custom_call.1} parent=1 // pred_fallthru
      _
    // Predicated region
    $region14: #{tpu_custom_call.1} parent=1 // pred_check
      _
    $region15: #{tpu_custom_call.1} parent=1 // pred_check_branch
      %77 = sbr.rel (0) target = $region17
    $region16: #{tpu_custom_call.1} parent=1 // pred_region
      %78 = dma.done [#allocation4], 256
    $region17: #{tpu_custom_call.1} parent=1 // pred_fallthru
      _
    %79 = vsyncpa [#allocation3], 1
    %80 = vsyncpa [#allocation4], 1

</llo_original>
